<compile_context>
chip_gen: v7x
topology: tpu7x:2x2x1
jax: 0.10.0
libtpu: 0.0.40
codegen_flags: <defaults>
</compile_context>

<pallas_src>
import functools
import math

import jax
import jax.numpy as jnp
from jax.experimental import pallas as pl
from jax.experimental.pallas import tpu as pltpu

# finite "-inf" so a fully-masked KV tile never produces exp(nan)/0*inf
_NEG_LARGE = -0.7 * float(jnp.finfo(jnp.float32).max)


# ----------------------------- kernels ------------------------------------ #

def _qkv_proj_kernel(x_ref, w_ref, b_ref, qkv_ref):
    """Fused Q|K|V projection for one (TM, H) row tile.

    The (H, 3H) weight / (1, 3H) bias blocks are grid-constant residents; the
    softmax 1/sqrt(D) scale is pre-folded into the Q columns by the wrapper.
    """
    x = x_ref[...].astype(jnp.bfloat16)                       # bf16 into the MXU
    y = jnp.dot(x, w_ref[...], preferred_element_type=jnp.float32)
    qkv_ref[...] = (y + b_ref[...]).astype(qkv_ref.dtype)     # bf16 back to HBM


def _flash_attn_kernel(q_ref, k_ref, v_ref, mask_ref, o_ref,
                       m_sc, l_sc, acc_sc, *, tk):
    """Online-softmax attention over a (G heads, TQ, D) query block.

    Grid = (BH // G, S // TQ, S // TK); the KV axis is last ("arbitrary") so the
    running max / denominator / accumulator stay resident in VMEM scratch and
    the output block is written exactly once (lane-dense store).
    """
    kv = pl.program_id(2)

    @pl.when(kv == 0)
    def _():
        m_sc[...] = jnp.full_like(m_sc, _NEG_LARGE)
        l_sc[...] = jnp.zeros_like(l_sc)
        acc_sc[...] = jnp.zeros_like(acc_sc)

    # scores (G, TQ, TK): bf16 operands on the MXU, f32 accumulation.
    # 1/sqrt(D) is already folded into Q by the projection kernel.
    s = jnp.einsum('gqd,gkd->gqk', q_ref[...], k_ref[...],
                   preferred_element_type=jnp.float32)
    start = pl.multiple_of(kv * tk, tk)
    s = s + mask_ref[:, :, pl.ds(start, tk)]        # resident (1,1,S) mask slice

    m_new = jnp.maximum(m_sc[...], s.max(axis=-1, keepdims=True))
    alpha = jnp.exp(m_sc[...] - m_new)
    # exp in bf16 feeds the PV matmul directly and roughly doubles EUP
    # throughput on v6e/v7x (v5e transparently extends to f32).
    p = jnp.exp((s - m_new).astype(jnp.bfloat16))
    l_sc[...] = alpha * l_sc[...] + p.sum(axis=-1, keepdims=True,
                                          dtype=jnp.float32)
    acc_sc[...] = alpha * acc_sc[...] + jnp.einsum(
        'gqk,gkd->gqd', p, v_ref[...], preferred_element_type=jnp.float32)
    m_sc[...] = m_new

    @pl.when(kv == pl.num_programs(2) - 1)
    def _():
        # approx reciprocal (~1e-4 rel err) is below the bf16 output precision.
        o_ref[...] = (acc_sc[...] *
                      pl.reciprocal(l_sc[...], approx=True)).astype(o_ref.dtype)


# ----------------------------- heuristics ---------------------------------- #

def _pick_tile(n, target):
    """Largest tile <= target that divides n and is a multiple of 8.

    Falls back to the full dimension when no such divisor exists (the TPU
    (8,128) block rule requires divisible-by-8 or full-extent sublane tiles).
    """
    if n <= target:
        return n
    for t in range(target, 7, -1):
        if n % t == 0 and t % 8 == 0:
            return t
    return n


def _default_vmem_limit_bytes():
    """~48 MiB on 64 MiB-VMEM parts (v7x), ~96 MiB on 128 MiB parts (v5e/v6e)."""
    try:
        cap = int(pltpu.get_tpu_info().vmem_capacity_bytes)
    except Exception:
        return 48 << 20            # conservative fallback (safe on every part)
    if cap >= (96 << 20):
        return 96 << 20
    return min(48 << 20, (cap * 3) // 4)


def _pick_head_group(num_heads, bh, tq, tk, d, budget_bytes):
    """Largest divisor G of num_heads whose per-step VMEM footprint fits.

    Prefers keeping >= 2 blocks along the head/batch grid axis so both v7x
    TensorCores get work.
    """
    def est(g):
        qo = 8 * g * tq * d           # q + out tiles, bf16, double-buffered
        kv = 8 * g * tk * d           # k + v tiles, bf16, double-buffered
        acc = 4 * g * tq * d          # f32 accumulator scratch
        tmp = 6 * g * tq * tk         # f32 scores + bf16 probs intermediates
        return qo + kv + acc + tmp + (64 << 10)

    fits = [g for g in range(1, num_heads + 1)
            if num_heads % g == 0 and est(g) <= budget_bytes]
    if not fits:
        return 1
    pref = [g for g in fits if bh // g >= 2]
    return max(pref) if pref else max(fits)


# ----------------------------- wrapper ------------------------------------ #

def bert_self_attention(hidden_states, attention_mask, params, num_heads, *,
                        tm=None, tq=None, tk=None, head_group=None,
                        vmem_limit_bytes=None):
    """BertSelfAttention forward (eval mode). Returns (context, None).

    hidden_states: (B, S, H) f32. attention_mask: additive, (B, 1, 1, S).
    Q/K/V and the attention output are kept in bf16 internally (MXU dtype);
    the returned context is cast back to hidden_states.dtype.
    """
    B, S, H = hidden_states.shape
    assert H % num_heads == 0, "hidden size must be divisible by num heads"
    D = H // num_heads
    M = B * S
    BH = B * num_heads

    if vmem_limit_bytes is None:
        vmem_limit_bytes = _default_vmem_limit_bytes()

    TM = _pick_tile(M, tm or (1024 if vmem_limit_bytes >= (80 << 20) else 512))
    TQ = _pick_tile(S, tq or 256)
    TK = _pick_tile(S, tk or 512)
    G = head_group or _pick_head_group(num_heads, BH, TQ, TK, D,
                                       vmem_limit_bytes // 2)
    assert num_heads % G == 0

    # --- kernel 1: fused QKV projection ------------------------------------ #
    scale = 1.0 / math.sqrt(D)
    # Fold the softmax 1/sqrt(D) into the Q weights/bias, fuse the three
    # projections into one (H, 3H) matmul, cast weights to bf16 once.
    wqkv = jnp.concatenate([params["wq"] * scale, params["wk"], params["wv"]],
                           axis=1).astype(jnp.bfloat16)
    bqkv = jnp.concatenate([params["bq"] * scale, params["bk"], params["bv"]],
                           axis=1).astype(jnp.float32)

    x2 = hidden_states.reshape(M, H)
    row_spec = pl.BlockSpec((TM, H), lambda i: (i, 0))
    out_row_spec = pl.BlockSpec((TM, 3 * H), lambda i: (i, 0))

    def _run_proj(single_buffer_weights):
        extra = ({"pipeline_mode": pl.Buffered(1)}
                 if single_buffer_weights else {})
        w_spec = pl.BlockSpec((H, 3 * H), lambda i: (0, 0), **extra)
        b_spec = pl.BlockSpec((1, 3 * H), lambda i: (0, 0), **extra)
        return pl.pallas_call(
            _qkv_proj_kernel,
            out_shape=jax.ShapeDtypeStruct((M, 3 * H), jnp.bfloat16),
            grid=(M // TM,),
            in_specs=[row_spec, w_spec, b_spec],
            out_specs=out_row_spec,
            compiler_params=pltpu.CompilerParams(
                dimension_semantics=("parallel",),
                vmem_limit_bytes=vmem_limit_bytes),
        )(x2, wqkv, bqkv)

    try:
        # grid-constant weight/bias blocks: single-buffered (saves a full weight
        # copy of VMEM — matters most on v7x's 64 MiB).
        qkv2 = _run_proj(True)
    except Exception:
        qkv2 = _run_proj(False)   # fallback if pipeline_mode is unavailable

    # split heads: one bf16 relayout in XLA, (B,S,3,nH,D) -> (3, B*nH, S, D)
    qkvh = (qkv2.reshape(B, S, 3, num_heads, D)
                 .transpose(2, 0, 3, 1, 4)
                 .reshape(3, BH, S, D))
    qh, kh, vh = qkvh[0], qkvh[1], qkvh[2]

    mask3 = attention_mask.reshape(B, 1, S).astype(jnp.float32)

    # --- kernel 2: flash attention, G heads per grid step ------------------- #
    q_spec = pl.BlockSpec((G, TQ, D), lambda g, qi, ki: (g, qi, 0))
    kv_spec = pl.BlockSpec((G, TK, D), lambda g, qi, ki: (g, ki, 0))
    # mask is resident per batch (index_map ignores qi/ki); sliced in-kernel
    mask_spec = pl.BlockSpec((1, 1, S),
                             lambda g, qi, ki: ((g * G) // num_heads, 0, 0))
    out_spec = pl.BlockSpec((G, TQ, D), lambda g, qi, ki: (g, qi, 0))

    ctx = pl.pallas_call(
        functools.partial(_flash_attn_kernel, tk=TK),
        out_shape=jax.ShapeDtypeStruct((BH, S, D), jnp.bfloat16),
        grid=(BH // G, S // TQ, S // TK),
        in_specs=[q_spec, kv_spec, kv_spec, mask_spec],
        out_specs=out_spec,
        scratch_shapes=[pltpu.VMEM((G, TQ, 1), jnp.float32),   # running max
                        pltpu.VMEM((G, TQ, 1), jnp.float32),   # running denom
                        pltpu.VMEM((G, TQ, D), jnp.float32)],  # accumulator
        compiler_params=pltpu.CompilerParams(
            dimension_semantics=("parallel", "parallel", "arbitrary"),
            vmem_limit_bytes=vmem_limit_bytes),
    )(qh, kh, vh, mask3)

    # merge heads: one bf16 relayout; cast back to the input dtype at the end
    context = (ctx.reshape(B, num_heads, S, D)
                  .transpose(0, 2, 1, 3)
                  .reshape(B, S, H)
                  .astype(hidden_states.dtype))
    # TODO(synk): attention-prob dropout is a training-time op; the eval-mode
    #             forward (what we implement) is the identity, so it's omitted.
    return context, None


# ----------------------------- reference / demo ---------------------------- #

def init_params(key, hidden):
    ks = jax.random.split(key, 6)
    std = 0.02
    return {
        # stored as (in, out) for the kernel (torch Linear weight is (out, in))
        "wq": (std * jax.random.normal(ks[0], (hidden, hidden))).astype(jnp.float32),
        "wk": (std * jax.random.normal(ks[1], (hidden, hidden))).astype(jnp.float32),
        "wv": (std * jax.random.normal(ks[2], (hidden, hidden))).astype(jnp.float32),
        "bq": (std * jax.random.normal(ks[3], (1, hidden))).astype(jnp.float32),
        "bk": (std * jax.random.normal(ks[4], (1, hidden))).astype(jnp.float32),
        "bv": (std * jax.random.normal(ks[5], (1, hidden))).astype(jnp.float32),
    }


def _reference(x, mask, p, num_heads):
    B, S, H = x.shape
    D = H // num_heads
    q = x @ p["wq"] + p["bq"][0]
    k = x @ p["wk"] + p["bk"][0]
    v = x @ p["wv"] + p["bv"][0]

    def split(t):
        return t.reshape(B, S, num_heads, D).transpose(0, 2, 1, 3)

    q, k, v = split(q), split(k), split(v)
    scores = jnp.einsum('bhqd,bhkd->bhqk', q, k) / math.sqrt(D) + mask
    probs = jax.nn.softmax(scores, axis=-1)
    ctx = jnp.einsum('bhqk,bhkd->bhqd', probs, v)
    return ctx.transpose(0, 2, 1, 3).reshape(B, S, H)


if __name__ == "__main__":
    B, S, H, NH = 2, 8, 32, 4
    key = jax.random.PRNGKey(0)
    kx, kp = jax.random.split(key)
    x = jax.random.normal(kx, (B, S, H), dtype=jnp.float32)
    params = init_params(kp, H)

    # additive attention mask, torch layout (B, 1, 1, S): 0 keep / -10000 drop
    attention_mask = jnp.zeros((B, 1, 1, S), jnp.float32)
    attention_mask = attention_mask.at[1, 0, 0, -2:].set(-10000.0)

    context, probs = bert_self_attention(x, attention_mask, params, NH)
    jax.block_until_ready(context)

    ctx_ref = _reference(x, attention_mask, params, NH)
    # bf16 MXU inputs / bf16 attention output (f32 accumulation) -> bf16-level
    # tolerance is the documented numerics contract of this kernel.
    err = float(jnp.max(jnp.abs(context - ctx_ref)))
    assert jnp.allclose(context, ctx_ref, atol=2e-2, rtol=2e-2), err
    assert probs is None
    print("KERNEL_OK")
</pallas_src>

<mosaic_0001>
module attributes {stable_mosaic.version = 11 : i64} {
  func.func @_qkv_proj_kernel(%arg0: i32, %arg1: memref<16x32xf32, #tpu.memory_space<vmem>>, %arg2: memref<32x96xbf16, #tpu.memory_space<vmem>>, %arg3: memref<1x96xf32, #tpu.memory_space<vmem>>, %arg4: memref<16x96xbf16, #tpu.memory_space<vmem>>) attributes {dimension_semantics = [#tpu.dimension_semantics<parallel>], iteration_bounds = array<i64: 1>, scalar_prefetch = 0 : i64, scratch_operands = 0 : i64, tpu.core_type = #tpu.core_type<tc>, window_params = [{transform_indices = @transform_0, window_bounds = array<i64: 16, 32>}, {pipeline_mode = #tpu.pipeline_mode<synchronous>, transform_indices = @transform_1, window_bounds = array<i64: 32, 96>}, {pipeline_mode = #tpu.pipeline_mode<synchronous>, transform_indices = @transform_2, window_bounds = array<i64: 1, 96>}, {transform_indices = @transform_3, window_bounds = array<i64: 16, 96>}]} {
    %c0 = arith.constant 0 : index
    %c0_0 = arith.constant 0 : index
    %0 = vector.load %arg1[%c0, %c0_0] : memref<16x32xf32, #tpu.memory_space<vmem>>, vector<16x32xf32>
    %1 = arith.truncf %0 : vector<16x32xf32> to vector<16x32xbf16>
    %c0_1 = arith.constant 0 : index
    %c0_2 = arith.constant 0 : index
    %2 = vector.load %arg2[%c0_1, %c0_2] : memref<32x96xbf16, #tpu.memory_space<vmem>>, vector<32x96xbf16>
    %cst = arith.constant dense<0.000000e+00> : vector<16x96xf32>
    %3 = tpu.matmul %1, %2, %cst {dimension_numbers = #tpu.dot_dimension_numbers<[1], [0], [0], [1], [0, 0, 1, 1], [], []>} : vector<16x32xbf16>, vector<32x96xbf16>, vector<16x96xf32> -> vector<16x96xf32>
    %c0_3 = arith.constant 0 : index
    %c0_4 = arith.constant 0 : index
    %4 = vector.load %arg3[%c0_3, %c0_4] : memref<1x96xf32, #tpu.memory_space<vmem>>, vector<1x96xf32>
    %5 = vector.broadcast %4 : vector<1x96xf32> to vector<16x96xf32>
    %6 = arith.addf %3, %5 : vector<16x96xf32>
    %7 = arith.truncf %6 : vector<16x96xf32> to vector<16x96xbf16>
    %c0_5 = arith.constant 0 : index
    %c0_6 = arith.constant 0 : index
    %8 = vector.load %arg4[%c0_5, %c0_6] : memref<16x96xbf16, #tpu.memory_space<vmem>>, vector<16x96xbf16>
    tpu.vector_store %arg4[%c0_5, %c0_6], %7 {strides = array<i32>} : memref<16x96xbf16, #tpu.memory_space<vmem>>, vector<16x96xbf16>,
    return
  }
  func.func @transform_0(%arg0: i32) -> (i32, i32) {
    %c0_i32 = arith.constant 0 : i32
    %c0_i32_0 = arith.constant 0 : i32
    return %arg0, %c0_i32 : i32, i32
  }
  func.func @transform_1(%arg0: i32) -> (i32, i32) {
    %c0_i32 = arith.constant 0 : i32
    %c0_i32_0 = arith.constant 0 : i32
    %c0_i32_1 = arith.constant 0 : i32
    return %c0_i32, %c0_i32_0 : i32, i32
  }
  func.func @transform_2(%arg0: i32) -> (i32, i32) {
    %c0_i32 = arith.constant 0 : i32
    %c0_i32_0 = arith.constant 0 : i32
    %c0_i32_1 = arith.constant 0 : i32
    return %c0_i32, %c0_i32_0 : i32, i32
  }
  func.func @transform_3(%arg0: i32) -> (i32, i32) {
    %c0_i32 = arith.constant 0 : i32
    %c0_i32_0 = arith.constant 0 : i32
    return %arg0, %c0_i32 : i32, i32
  }
}

module attributes {stable_mosaic.version = 11 : i64} {
  func.func @_qkv_proj_kernel(%arg0: i32, %arg1: memref<16x32xf32, #tpu.memory_space<vmem>>, %arg2: memref<32x96xbf16, #tpu.memory_space<vmem>>, %arg3: memref<1x96xf32, #tpu.memory_space<vmem>>, %arg4: memref<16x96xbf16, #tpu.memory_space<vmem>>) attributes {dimension_semantics = [#tpu.dimension_semantics<parallel>], iteration_bounds = array<i64: 1>, scalar_prefetch = 0 : i64, scratch_operands = 0 : i64, tpu.core_type = #tpu.core_type<tc>, window_params = [{transform_indices = @transform_0, window_bounds = array<i64: 16, 32>}, {pipeline_mode = #tpu.pipeline_mode<synchronous>, transform_indices = @transform_1, window_bounds = array<i64: 32, 96>}, {pipeline_mode = #tpu.pipeline_mode<synchronous>, transform_indices = @transform_2, window_bounds = array<i64: 1, 96>}, {transform_indices = @transform_3, window_bounds = array<i64: 16, 96>}]} {
    %c0 = arith.constant 0 : index
    %c0_0 = arith.constant 0 : index
    %0 = vector.load %arg1[%c0, %c0_0] : memref<16x32xf32, #tpu.memory_space<vmem>>, vector<16x32xf32>
    %1 = arith.truncf %0 : vector<16x32xf32> to vector<16x32xbf16>
    %c0_1 = arith.constant 0 : index
    %c0_2 = arith.constant 0 : index
    %2 = vector.load %arg2[%c0_1, %c0_2] : memref<32x96xbf16, #tpu.memory_space<vmem>>, vector<32x96xbf16>
    %cst = arith.constant dense<0.000000e+00> : vector<16x96xf32>
    %3 = tpu.matmul %1, %2, %cst {dimension_numbers = #tpu.dot_dimension_numbers<[1], [0], [0], [1], [0, 0, 1, 1], [], []>} : vector<16x32xbf16>, vector<32x96xbf16>, vector<16x96xf32> -> vector<16x96xf32>
    %c0_3 = arith.constant 0 : index
    %c0_4 = arith.constant 0 : index
    %4 = vector.load %arg3[%c0_3, %c0_4] : memref<1x96xf32, #tpu.memory_space<vmem>>, vector<1x96xf32>
    %5 = vector.broadcast %4 : vector<1x96xf32> to vector<16x96xf32>
    %6 = arith.addf %3, %5 : vector<16x96xf32>
    %7 = arith.truncf %6 : vector<16x96xf32> to vector<16x96xbf16>
    %c0_5 = arith.constant 0 : index
    %c0_6 = arith.constant 0 : index
    %8 = vector.load %arg4[%c0_5, %c0_6] : memref<16x96xbf16, #tpu.memory_space<vmem>>, vector<16x96xbf16>
    tpu.vector_store %arg4[%c0_5, %c0_6], %7 {strides = array<i32>} : memref<16x96xbf16, #tpu.memory_space<vmem>>, vector<16x96xbf16>,
    return
  }
  func.func @transform_0(%arg0: i32) -> (i32, i32) {
    %c0_i32 = arith.constant 0 : i32
    %c0_i32_0 = arith.constant 0 : i32
    return %arg0, %c0_i32 : i32, i32
  }
  func.func @transform_1(%arg0: i32) -> (i32, i32) {
    %c0_i32 = arith.constant 0 : i32
    %c0_i32_0 = arith.constant 0 : i32
    %c0_i32_1 = arith.constant 0 : i32
    return %c0_i32, %c0_i32_0 : i32, i32
  }
  func.func @transform_2(%arg0: i32) -> (i32, i32) {
    %c0_i32 = arith.constant 0 : i32
    %c0_i32_0 = arith.constant 0 : i32
    %c0_i32_1 = arith.constant 0 : i32
    return %c0_i32, %c0_i32_0 : i32, i32
  }
  func.func @transform_3(%arg0: i32) -> (i32, i32) {
    %c0_i32 = arith.constant 0 : i32
    %c0_i32_0 = arith.constant 0 : i32
    return %arg0, %c0_i32 : i32, i32
  }
}

</mosaic_0001>

<llo_original>
// kernel: tpu_custom_call.1
$region0: #{tpu_custom_call.1}
  #allocation0 [shape = 'u32[]', space=smem, size = 0x4, offset = 0x4, fixed_abs, tag = 'smem constant byte address 0x4 - core index']
  #allocation1 [shape = 'u32[144,128]{1,0:T(1,128)}', space=vmem, size = 0x12000, scoped, tag = 'internal scratch']
  %s0 = inlined_call_operand.hbm [shape: f32[16,32], index: 0, kind: input, shape index: {}]
  %s1 = inlined_call_operand.hbm [shape: bf16[32,96], index: 1, kind: input, shape index: {}]
  %s2 = inlined_call_operand.vmem [shape: f32[1,96], index: 2, kind: input, shape index: {}]
  %s3 = inlined_call_operand.hbm [shape: bf16[16,96], index: 3, kind: output, shape index: {}]
  %s4 = sld [smem:[#allocation0]]
  $region30: #{tpu_custom_call.1} parent=0
    _
  %s6 = ssub.s32 1, %s4
  %s7 = scalar_select 0, %s6, %s4
  $region1: #{tpu_custom_call.1} parent=0
    #allocation2 [shape = 'u8[8192]{0}', space=vmem, size = 0x2000, scoped, tag = 'input window, operand 0, single buffered']
    #allocation3 [shape = 's32[1]{0}', space=sflag, size = 0x4, scoped, tag = 'scoped memory for tpu_custom_call.1']
    #allocation4 [shape = 's32[1]{0}', space=sflag, size = 0x4, scoped, tag = 'scoped memory for tpu_custom_call.1']
    #allocation5 [shape = 'u8[8192]{0}', space=vmem, size = 0x2000, scoped, tag = 'input window, operand 1, single buffered']
    #allocation6 [shape = 's32[1]{0}', space=sflag, size = 0x4, scoped, tag = 'scoped memory for tpu_custom_call.1']
    #allocation7 [shape = 'u8[4096]{0}', space=vmem, size = 0x1000, scoped, tag = 'output window, operand 0, single buffered']
    %8 = vsyncpa [#allocation3], 0
    %9 = vsyncpa [#allocation6], 0
    %10 = vsyncpa [#allocation4], 0
    // Predicated region
    $region2: #{tpu_custom_call.1} parent=1 // pred_check
      _
    $region3: #{tpu_custom_call.1} parent=1 // pred_check_branch
      %12 = sbr.rel (0) target = $region5
    $region4: #{tpu_custom_call.1} parent=1 // pred_region
      %s14 = ssub.s32 256, 256
      %15 = vsyncadd [#allocation3], %s14
      %s16 = sshll.u32 [#allocation2], 4
      %s17 = int_to_ptr.vmem [resolvable:$true] %s16
      %22 = dma.hbm_to_vmem [thread:$0]  %s0, 256, %s17, [#allocation3], 128, 128, 8
    $region5: #{tpu_custom_call.1} parent=1 // pred_fallthru
      _
    // Predicated region
    $region6: #{tpu_custom_call.1} parent=1 // pred_check
      _
    $region7: #{tpu_custom_call.1} parent=1 // pred_check_branch
      %24 = sbr.rel (0) target = $region9
    $region8: #{tpu_custom_call.1} parent=1 // pred_region
      %s26 = ssub.s32 256, 256
      %27 = vsyncadd [#allocation6], %s26
      %s28 = sshll.u32 [#allocation5], 4
      %s29 = int_to_ptr.vmem [resolvable:$true] %s28
      %34 = dma.hbm_to_vmem [thread:$0]  %s1, 256, %s29, [#allocation6], 64, 64, 4
    $region9: #{tpu_custom_call.1} parent=1 // pred_fallthru
      _
    // Predicated region
    $region10: #{tpu_custom_call.1} parent=1 // pred_check
      _
    $region11: #{tpu_custom_call.1} parent=1 // pred_check_branch
      %36 = sbr.rel (0) target = $region13
    $region12: #{tpu_custom_call.1} parent=1 // pred_region
      _
    $region13: #{tpu_custom_call.1} parent=1 // pred_fallthru
      _
    // Predicated region
    $region14: #{tpu_custom_call.1} parent=1 // pred_check
      _
    $region15: #{tpu_custom_call.1} parent=1 // pred_check_branch
      %38 = sbr.rel (0) target = $region17
    $region16: #{tpu_custom_call.1} parent=1 // pred_region
      %39 = dma.done [#allocation3], 256
    $region17: #{tpu_custom_call.1} parent=1 // pred_fallthru
      _
    // Predicated region
    $region18: #{tpu_custom_call.1} parent=1 // pred_check
      _
    $region19: #{tpu_custom_call.1} parent=1 // pred_check_branch
      %41 = sbr.rel (0) target = $region21
    $region20: #{tpu_custom_call.1} parent=1 // pred_region
      %42 = dma.done [#allocation6], 256
    $region21: #{tpu_custom_call.1} parent=1 // pred_fallthru
      _
    %v44 = vld [vmem:[#allocation2] sm:$0xff]
    %v45 = vld [vmem:[#allocation2 + $0x8] sm:$0xff]
    %v46 = vpack.c.bf16 %v45, %v44
    %v47 = vld [vmem:[#allocation5] sm:$0xf]
    %v48 = vld [vmem:[#allocation5 + $0x4] sm:$0xf]
    %v49 = vld [vmem:[#allocation5 + $0x8] sm:$0xf]
    %v50 = vld [vmem:[#allocation5 + $0xc] sm:$0xf]
    %v51 = vld [vmem:[%s2] sm:$0x1]
    %v53 = vlaneseq
    %v54 = vshrl.u32 %v53, 7
    %v55 = vsub.s32 0, %v54
    %v56 = vrot.slane %v51, %v55
    %v62 = vunpack.c.l.b16 %v47
    %v63 = vunpack.c.l.b16 %v48
    %v64 = vunpack.c.l.b16 %v49
    %v65 = vunpack.c.l.b16 %v50
    %v66 = vpack.c.b16 %v63, %v62
    %v67 = vpack.c.b16 %v65, %v64
    %vm70 = vcmask 261120
    %v72 = vsel %vm70, %v46, 0
    %74 = vmatprep.subr.bf16.mxu0 0
    %75 = vmatpush1.bf16.msra.mxu0 %v66
    %76 = vmatprep.subr.bf16.mxu0 0
    %77 = vmatpush1.bf16.msra.mxu0 %v67
    %78 = vmatprep.subr.bf16.mxu0 0
    %79 = vmatpush1.bf16.msra.mxu0 0
    %80 = vmatprep.subr.bf16.mxu0 0
    %81 = vmatpush1.bf16.msra.mxu0 0
    %82 = vmatprep.subr.bf16.mxu0 0
    %83 = vmatpush1.bf16.msra.mxu0 0
    %84 = vmatprep.subr.bf16.mxu0 0
    %85 = vmatpush1.bf16.msra.mxu0 0
    %86 = vmatprep.subr.bf16.mxu0 0
    %87 = vmatpush1.bf16.msra.mxu0 0
    %88 = vmatprep.subr.bf16.mxu0 0
    %89 = vmatpush1.bf16.msra.mxu0 0
    %90 = vmatprep.subr.bf16.mxu0 0
    %91 = vmatpush1.bf16.msra.mxu0 0
    %92 = vmatprep.subr.bf16.mxu0 0
    %93 = vmatpush1.bf16.msra.mxu0 0
    %94 = vmatprep.subr.bf16.mxu0 0
    %95 = vmatpush1.bf16.msra.mxu0 0
    %96 = vmatprep.subr.bf16.mxu0 0
    %97 = vmatpush1.bf16.msra.mxu0 0
    %98 = vmatprep.subr.bf16.mxu0 0
    %99 = vmatpush1.bf16.msra.mxu0 0
    %100 = vmatprep.subr.bf16.mxu0 0
    %101 = vmatpush1.bf16.msra.mxu0 0
    %102 = vmatprep.subr.bf16.mxu0 0
    %103 = vmatpush1.bf16.msra.mxu0 0
    %104 = vmatprep.subr.bf16.mxu0 0
    %105 = vmatpush1.bf16.msra.mxu0 0
    %106 = vmatprep.mubr.bf16.mxu0 0
    %107 = vmatmul.mubr.bf16.gmra.mrb[0].mxu0 %v72
    %v108 = vpop.f32.mrb[0].mxu0
    %v109 = vadd.f32 %v56, %v108
    %v110 = vpop.f32.mrb[0].mxu0
    %v111 = vpop.f32.mrb[0].mxu0
    %v112 = vadd.f32 %v56, %v111
    %v113 = vpop.f32.mrb[0].mxu0
    %114 = vdwg.mxu0
    %v115 = vpack.c.bf16 %v112, %v109
    %v117 = vunpack.c.l.b16 %v115
    %v118 = vunpack.c.h.b16 %v115
    %v119 = vpack.c.b16 %v117, %v117
    %v120 = vpack.c.b16 %v118, %v118
    %vm123 = vcmask 781312
    %124 = vst.msk [vmem:[#allocation7] sm:$0xf] %vm123, %v119
    %125 = vst.msk [vmem:[#allocation7 + $0x4] sm:$0xf] %vm123, %v120
    // Predicated region
    $region22: #{tpu_custom_call.1} parent=1 // pred_check
      _
    $region23: #{tpu_custom_call.1} parent=1 // pred_check_branch
      %127 = sbr.rel (0) target = $region25
    $region24: #{tpu_custom_call.1} parent=1 // pred_region
      %s129 = ssub.s32 128, 128
      %130 = vsyncadd [#allocation4], %s129
      %s131 = sshll.u32 [#allocation7], 4
      %s132 = int_to_ptr.vmem [resolvable:$true] %s131
      %137 = dma.vmem_to_hbm [thread:$0]  %s132, 128, %s3, [#allocation4], 64, 64, 4
    $region25: #{tpu_custom_call.1} parent=1 // pred_fallthru
      _
    // Predicated region
    $region26: #{tpu_custom_call.1} parent=1 // pred_check
      _
    $region27: #{tpu_custom_call.1} parent=1 // pred_check_branch
      %139 = sbr.rel (0) target = $region29
    $region28: #{tpu_custom_call.1} parent=1 // pred_region
      %140 = dma.done [#allocation4], 128
    $region29: #{tpu_custom_call.1} parent=1 // pred_fallthru
      _
    %141 = vsyncpa [#allocation3], 1
    %142 = vsyncpa [#allocation6], 1
    %143 = vsyncpa [#allocation4], 1

// kernel: tpu_custom_call.1
$region0: #{tpu_custom_call.1}
  #allocation0 [shape = 'u32[]', space=smem, size = 0x4, offset = 0x4, fixed_abs, tag = 'smem constant byte address 0x4 - core index']
  #allocation1 [shape = 'u32[144,128]{1,0:T(1,128)}', space=vmem, size = 0x12000, scoped, tag = 'internal scratch']
  %s0 = inlined_call_operand.hbm [shape: f32[16,32], index: 0, kind: input, shape index: {}]
  %s1 = inlined_call_operand.hbm [shape: bf16[32,96], index: 1, kind: input, shape index: {}]
  %s2 = inlined_call_operand.vmem [shape: f32[1,96], index: 2, kind: input, shape index: {}]
  %s3 = inlined_call_operand.hbm [shape: bf16[16,96], index: 3, kind: output, shape index: {}]
  %s4 = sld [smem:[#allocation0]]
  $region30: #{tpu_custom_call.1} parent=0
    _
  %s6 = ssub.s32 1, %s4
  %s7 = scalar_select 0, %s6, %s4
  $region1: #{tpu_custom_call.1} parent=0
    #allocation2 [shape = 'u8[8192]{0}', space=vmem, size = 0x2000, scoped, tag = 'input window, operand 0, single buffered']
    #allocation3 [shape = 's32[1]{0}', space=sflag, size = 0x4, scoped, tag = 'scoped memory for tpu_custom_call.1']
    #allocation4 [shape = 's32[1]{0}', space=sflag, size = 0x4, scoped, tag = 'scoped memory for tpu_custom_call.1']
    #allocation5 [shape = 'u8[8192]{0}', space=vmem, size = 0x2000, scoped, tag = 'input window, operand 1, single buffered']
    #allocation6 [shape = 's32[1]{0}', space=sflag, size = 0x4, scoped, tag = 'scoped memory for tpu_custom_call.1']
    #allocation7 [shape = 'u8[4096]{0}', space=vmem, size = 0x1000, scoped, tag = 'output window, operand 0, single buffered']
    %8 = vsyncpa [#allocation3], 0
    %9 = vsyncpa [#allocation6], 0
    %10 = vsyncpa [#allocation4], 0
    // Predicated region
    $region2: #{tpu_custom_call.1} parent=1 // pred_check
      _
    $region3: #{tpu_custom_call.1} parent=1 // pred_check_branch
      %12 = sbr.rel (0) target = $region5
    $region4: #{tpu_custom_call.1} parent=1 // pred_region
      %s14 = ssub.s32 256, 256
      %15 = vsyncadd [#allocation3], %s14
      %s16 = sshll.u32 [#allocation2], 4
      %s17 = int_to_ptr.vmem [resolvable:$true] %s16
      %22 = dma.hbm_to_vmem [thread:$0]  %s0, 256, %s17, [#allocation3], 128, 128, 8
    $region5: #{tpu_custom_call.1} parent=1 // pred_fallthru
      _
    // Predicated region
    $region6: #{tpu_custom_call.1} parent=1 // pred_check
      _
    $region7: #{tpu_custom_call.1} parent=1 // pred_check_branch
      %24 = sbr.rel (0) target = $region9
    $region8: #{tpu_custom_call.1} parent=1 // pred_region
      %s26 = ssub.s32 256, 256
      %27 = vsyncadd [#allocation6], %s26
      %s28 = sshll.u32 [#allocation5], 4
      %s29 = int_to_ptr.vmem [resolvable:$true] %s28
      %34 = dma.hbm_to_vmem [thread:$0]  %s1, 256, %s29, [#allocation6], 64, 64, 4
    $region9: #{tpu_custom_call.1} parent=1 // pred_fallthru
      _
    // Predicated region
    $region10: #{tpu_custom_call.1} parent=1 // pred_check
      _
    $region11: #{tpu_custom_call.1} parent=1 // pred_check_branch
      %36 = sbr.rel (0) target = $region13
    $region12: #{tpu_custom_call.1} parent=1 // pred_region
      _
    $region13: #{tpu_custom_call.1} parent=1 // pred_fallthru
      _
    // Predicated region
    $region14: #{tpu_custom_call.1} parent=1 // pred_check
      _
    $region15: #{tpu_custom_call.1} parent=1 // pred_check_branch
      %38 = sbr.rel (0) target = $region17
    $region16: #{tpu_custom_call.1} parent=1 // pred_region
      %39 = dma.done [#allocation3], 256
    $region17: #{tpu_custom_call.1} parent=1 // pred_fallthru
      _
    // Predicated region
    $region18: #{tpu_custom_call.1} parent=1 // pred_check
      _
    $region19: #{tpu_custom_call.1} parent=1 // pred_check_branch
      %41 = sbr.rel (0) target = $region21
    $region20: #{tpu_custom_call.1} parent=1 // pred_region
      %42 = dma.done [#allocation6], 256
    $region21: #{tpu_custom_call.1} parent=1 // pred_fallthru
      _
    %v44 = vld [vmem:[#allocation2] sm:$0xff]
    %v45 = vld [vmem:[#allocation2 + $0x8] sm:$0xff]
    %v46 = vpack.c.bf16 %v45, %v44
    %v47 = vld [vmem:[#allocation5] sm:$0xf]
    %v48 = vld [vmem:[#allocation5 + $0x4] sm:$0xf]
    %v49 = vld [vmem:[#allocation5 + $0x8] sm:$0xf]
    %v50 = vld [vmem:[#allocation5 + $0xc] sm:$0xf]
    %v51 = vld [vmem:[%s2] sm:$0x1]
    %v53 = vlaneseq
    %v54 = vshrl.u32 %v53, 7
    %v55 = vsub.s32 0, %v54
    %v56 = vrot.slane %v51, %v55
    %v62 = vunpack.c.l.b16 %v47
    %v63 = vunpack.c.l.b16 %v48
    %v64 = vunpack.c.l.b16 %v49
    %v65 = vunpack.c.l.b16 %v50
    %v66 = vpack.c.b16 %v63, %v62
    %v67 = vpack.c.b16 %v65, %v64
    %vm70 = vcmask 261120
    %v72 = vsel %vm70, %v46, 0
    %74 = vmatprep.subr.bf16.mxu0 0
    %75 = vmatpush1.bf16.msra.mxu0 %v66
    %76 = vmatprep.subr.bf16.mxu0 0
    %77 = vmatpush1.bf16.msra.mxu0 %v67
    %78 = vmatprep.subr.bf16.mxu0 0
    %79 = vmatpush1.bf16.msra.mxu0 0
    %80 = vmatprep.subr.bf16.mxu0 0
    %81 = vmatpush1.bf16.msra.mxu0 0
    %82 = vmatprep.subr.bf16.mxu0 0
    %83 = vmatpush1.bf16.msra.mxu0 0
    %84 = vmatprep.subr.bf16.mxu0 0
    %85 = vmatpush1.bf16.msra.mxu0 0
    %86 = vmatprep.subr.bf16.mxu0 0
    %87 = vmatpush1.bf16.msra.mxu0 0
    %88 = vmatprep.subr.bf16.mxu0 0
    %89 = vmatpush1.bf16.msra.mxu0 0
    %90 = vmatprep.subr.bf16.mxu0 0
    %91 = vmatpush1.bf16.msra.mxu0 0
    %92 = vmatprep.subr.bf16.mxu0 0
    %93 = vmatpush1.bf16.msra.mxu0 0
    %94 = vmatprep.subr.bf16.mxu0 0
    %95 = vmatpush1.bf16.msra.mxu0 0
    %96 = vmatprep.subr.bf16.mxu0 0
    %97 = vmatpush1.bf16.msra.mxu0 0
    %98 = vmatprep.subr.bf16.mxu0 0
    %99 = vmatpush1.bf16.msra.mxu0 0
    %100 = vmatprep.subr.bf16.mxu0 0
    %101 = vmatpush1.bf16.msra.mxu0 0
    %102 = vmatprep.subr.bf16.mxu0 0
    %103 = vmatpush1.bf16.msra.mxu0 0
    %104 = vmatprep.subr.bf16.mxu0 0
    %105 = vmatpush1.bf16.msra.mxu0 0
    %106 = vmatprep.mubr.bf16.mxu0 0
    %107 = vmatmul.mubr.bf16.gmra.mrb[0].mxu0 %v72
    %v108 = vpop.f32.mrb[0].mxu0
    %v109 = vadd.f32 %v56, %v108
    %v110 = vpop.f32.mrb[0].mxu0
    %v111 = vpop.f32.mrb[0].mxu0
    %v112 = vadd.f32 %v56, %v111
    %v113 = vpop.f32.mrb[0].mxu0
    %114 = vdwg.mxu0
    %v115 = vpack.c.bf16 %v112, %v109
    %v117 = vunpack.c.l.b16 %v115
    %v118 = vunpack.c.h.b16 %v115
    %v119 = vpack.c.b16 %v117, %v117
    %v120 = vpack.c.b16 %v118, %v118
    %vm123 = vcmask 781312
    %124 = vst.msk [vmem:[#allocation7] sm:$0xf] %vm123, %v119
    %125 = vst.msk [vmem:[#allocation7 + $0x4] sm:$0xf] %vm123, %v120
    // Predicated region
    $region22: #{tpu_custom_call.1} parent=1 // pred_check
      _
    $region23: #{tpu_custom_call.1} parent=1 // pred_check_branch
      %127 = sbr.rel (0) target = $region25
    $region24: #{tpu_custom_call.1} parent=1 // pred_region
      %s129 = ssub.s32 128, 128
      %130 = vsyncadd [#allocation4], %s129
      %s131 = sshll.u32 [#allocation7], 4
      %s132 = int_to_ptr.vmem [resolvable:$true] %s131
      %137 = dma.vmem_to_hbm [thread:$0]  %s132, 128, %s3, [#allocation4], 64, 64, 4
    $region25: #{tpu_custom_call.1} parent=1 // pred_fallthru
      _
    // Predicated region
    $region26: #{tpu_custom_call.1} parent=1 // pred_check
      _
    $region27: #{tpu_custom_call.1} parent=1 // pred_check_branch
      %139 = sbr.rel (0) target = $region29
    $region28: #{tpu_custom_call.1} parent=1 // pred_region
      %140 = dma.done [#allocation4], 128
    $region29: #{tpu_custom_call.1} parent=1 // pred_fallthru
      _
    %141 = vsyncpa [#allocation3], 1
    %142 = vsyncpa [#allocation6], 1
    %143 = vsyncpa [#allocation4], 1

</llo_original>
